<compile_context>
chip_gen: v7x
topology: tpu7x:2x2x1
jax: 0.10.0
libtpu: 0.0.40
codegen_flags: <defaults>
</compile_context>

<pallas_src>
import jax
import jax.numpy as jnp
from jax.experimental import pallas as pl
from jax.experimental.pallas import tpu as pltpu


# ----------------------------- Pallas kernel -----------------------------

def _sim_kernel(x_ref, e_ref, o_ref):
    """x_ref: (B, D) features; e_ref: (D, Ct) pre-normalized, transposed
    embeddings; o_ref: (B, Ct) similarities."""
    # Upcast for the reduction / rsqrt (v5e VPU/EUP have no bf16); rsqrt goes
    # to the EUP slot.  No eps, matching PyTorch's x / x.norm() exactly.
    x = x_ref[...].astype(jnp.float32)
    scale = 100.0 * jax.lax.rsqrt(jnp.sum(x * x, axis=-1, keepdims=True))
    x_n = (x * scale).astype(e_ref.dtype)

    # Canonical (M,K)@(K,N) matmul on the MXU, f32 accumulation, direct store.
    o_ref[...] = jnp.dot(
        x_n, e_ref[...], preferred_element_type=jnp.float32
    ).astype(o_ref.dtype)


# ----------------------------- wrapper -----------------------------

def prepare_embeddings(embeddings):
    """Normalize rows of (C, D) embeddings and transpose to (D, C).

    Embeddings are static parameters, so this is done once outside the
    per-forward kernel (biggest algorithmic win from the review)."""
    e32 = embeddings.astype(jnp.float32)
    e_n = e32 * jax.lax.rsqrt(jnp.sum(e32 * e32, axis=-1, keepdims=True))
    # Keep the storage dtype (e.g. bf16) to keep the HBM->VMEM DMA cheap.
    return e_n.T.astype(embeddings.dtype)          # (D, C)


def _pick_c_tile(C):
    for t in (2048, 1024, 512, 256, 128):
        if C > t and C % t == 0:
            return t
    return C


def sim_classifier(x, embeddings, *, c_tile=None):
    """x: (B, D) image features; embeddings: (C, D). Returns squeeze of (B, C)."""
    B, D = x.shape
    C, D2 = embeddings.shape
    assert D == D2, "feature dims must match"

    e_nt = prepare_embeddings(embeddings)          # (D, C), done once per params

    if c_tile is None:
        c_tile = _pick_c_tile(C)
    n_tiles = C // c_tile

    if n_tiles == 1:
        # Tiny / single-tile case: no grid, full-block VMEM refs, one dispatch.
        out = pl.pallas_call(
            _sim_kernel,
            out_shape=jax.ShapeDtypeStruct((B, C), jnp.float32),
            in_specs=[pl.BlockSpec(memory_space=pltpu.MemorySpace.VMEM),
                      pl.BlockSpec(memory_space=pltpu.MemorySpace.VMEM)],
            out_specs=pl.BlockSpec(memory_space=pltpu.MemorySpace.VMEM),
        )(x, e_nt)
    else:
        # Tile over classes: keeps each (D, c_tile) block inside scoped VMEM
        # (v5e 16 MiB / v7x 32 MiB defaults) and lets both v7x TensorCores
        # work via the "parallel" grid axis.
        out = pl.pallas_call(
            _sim_kernel,
            out_shape=jax.ShapeDtypeStruct((B, C), jnp.float32),
            grid=(n_tiles,),
            in_specs=[pl.BlockSpec((B, D), lambda j: (0, 0)),
                      pl.BlockSpec((D, c_tile), lambda j: (0, j))],
            out_specs=pl.BlockSpec((B, c_tile), lambda j: (0, j)),
            compiler_params=pltpu.CompilerParams(
                dimension_semantics=("parallel",)),
        )(x, e_nt)

    # PyTorch: similarity.squeeze()
    return jnp.squeeze(out)


# ----------------------------------- main -----------------------------------

def _reference(x, embeddings):
    e_n = embeddings / jnp.linalg.norm(embeddings, axis=-1, keepdims=True)
    x_n = x / jnp.linalg.norm(x, axis=-1, keepdims=True)
    return jnp.squeeze(100.0 * (x_n @ e_n.T))


if __name__ == "__main__":
    key = jax.random.PRNGKey(0)
    ekey, xkey, e2key, x2key = jax.random.split(key, 4)

    # Small shapes matching the module: batch=2, num concepts=16, feature dim=512.
    B, C, D = 2, 16, 512
    embeddings = jax.random.normal(ekey, (C, D), dtype=jnp.float32)
    x = jax.random.normal(xkey, (B, D), dtype=jnp.float32)

    out = jax.block_until_ready(sim_classifier(x, embeddings))
    ref = _reference(x, embeddings)
    assert out.shape == (B, C), out.shape
    assert bool(jnp.all(jnp.isfinite(out)))
    assert bool(jnp.allclose(out, ref, atol=1e-3, rtol=1e-3))

    # Also exercise the tiled / parallel-grid path (still small: C=256 -> 2 tiles).
    B2, C2 = 8, 256
    embeddings2 = jax.random.normal(e2key, (C2, D), dtype=jnp.float32)
    x2 = jax.random.normal(x2key, (B2, D), dtype=jnp.float32)
    out2 = jax.block_until_ready(sim_classifier(x2, embeddings2, c_tile=128))
    ref2 = _reference(x2, embeddings2)
    assert out2.shape == (B2, C2), out2.shape
    assert bool(jnp.allclose(out2, ref2, atol=1e-3, rtol=1e-3))

    print("KERNEL_OK")
</pallas_src>

<mosaic_0001>
module attributes {stable_mosaic.version = 11 : i64} {
  func.func @_sim_kernel(%arg0: memref<2x512xf32, #tpu.memory_space<vmem>>, %arg1: memref<512x16xf32, #tpu.memory_space<vmem>>, %arg2: memref<2x16xf32, #tpu.memory_space<vmem>>) attributes {dimension_semantics = [], scalar_prefetch = 0 : i64, scratch_operands = 0 : i64, tpu.core_type = #tpu.core_type<tc>} {
    %c0 = arith.constant 0 : index
    %c0_0 = arith.constant 0 : index
    %0 = vector.load %arg0[%c0, %c0_0] : memref<2x512xf32, #tpu.memory_space<vmem>>, vector<2x512xf32>
    %1 = arith.mulf %0, %0 : vector<2x512xf32>
    %cst = arith.constant dense<0.000000e+00> : vector<2xf32>
    %2 = vector.multi_reduction <add>, %1, %cst [1] : vector<2x512xf32> to vector<2xf32>
    %3 = vector.shape_cast %2 : vector<2xf32> to vector<2x1xf32>
    %4 = math.rsqrt %3 : vector<2x1xf32>
    %cst_1 = arith.constant 1.000000e+02 : f32
    %5 = vector.broadcast %cst_1 : f32 to vector<2x1xf32>
    %6 = arith.mulf %5, %4 : vector<2x1xf32>
    %7 = vector.broadcast %6 : vector<2x1xf32> to vector<2x512xf32>
    %8 = arith.mulf %0, %7 : vector<2x512xf32>
    %c0_2 = arith.constant 0 : index
    %c0_3 = arith.constant 0 : index
    %9 = vector.load %arg1[%c0_2, %c0_3] : memref<512x16xf32, #tpu.memory_space<vmem>>, vector<512x16xf32>
    %cst_4 = arith.constant dense<0.000000e+00> : vector<2x16xf32>
    %10 = tpu.matmul %8, %9, %cst_4 {dimension_numbers = #tpu.dot_dimension_numbers<[1], [0], [0], [1], [0, 0, 1, 1], [], []>} : vector<2x512xf32>, vector<512x16xf32>, vector<2x16xf32> -> vector<2x16xf32>
    %c0_5 = arith.constant 0 : index
    %c0_6 = arith.constant 0 : index
    %11 = vector.load %arg2[%c0_5, %c0_6] : memref<2x16xf32, #tpu.memory_space<vmem>>, vector<2x16xf32>
    tpu.vector_store %arg2[%c0_5, %c0_6], %10 {strides = array<i32>} : memref<2x16xf32, #tpu.memory_space<vmem>>, vector<2x16xf32>,
    return
  }
}

</mosaic_0001>

<llo_original>
// kernel: tpu_custom_call.1
$region0: #{tpu_custom_call.1}
  #allocation0 [shape = 'u32[]', space=smem, size = 0x4, offset = 0x4, fixed_abs, tag = 'smem constant byte address 0x4 - core index']
  #allocation1 [shape = 'u32[144,128]{1,0:T(1,128)}', space=vmem, size = 0x12000, scoped, tag = 'internal scratch']
  %s0 = inlined_call_operand.vmem [shape: f32[2,512], index: 0, kind: input, shape index: {}]
  %s1 = inlined_call_operand.vmem [shape: f32[512,16], index: 1, kind: input, shape index: {}]
  %s2 = inlined_call_operand.hbm [shape: f32[2,16], index: 2, kind: output, shape index: {}]
  %s3 = sld [smem:[#allocation0]]
  $region18: #{tpu_custom_call.1} parent=0
    _
  %s5 = ssub.s32 1, %s3
  %s6 = scalar_select 0, %s5, %s3
  $region1: #{tpu_custom_call.1} parent=0
    #allocation2 [shape = 'u8[1024]{0}', space=vmem, size = 0x400, scoped, tag = 'output window, operand 0, single buffered']
    #allocation3 [shape = 's32[1]{0}', space=sflag, size = 0x4, scoped, tag = 'scoped memory for tpu_custom_call.1']
    %7 = vsyncpa [#allocation3], 0
    // Predicated region
    $region2: #{tpu_custom_call.1} parent=1 // pred_check
      _
    $region3: #{tpu_custom_call.1} parent=1 // pred_check_branch
      %9 = sbr.rel (0) target = $region5
    $region4: #{tpu_custom_call.1} parent=1 // pred_region
      _
    $region5: #{tpu_custom_call.1} parent=1 // pred_fallthru
      _
    // Predicated region
    $region6: #{tpu_custom_call.1} parent=1 // pred_check
      _
    $region7: #{tpu_custom_call.1} parent=1 // pred_check_branch
      %11 = sbr.rel (0) target = $region9
    $region8: #{tpu_custom_call.1} parent=1 // pred_region
      _
    $region9: #{tpu_custom_call.1} parent=1 // pred_fallthru
      _
    %v12 = vld [vmem:[%s0] sm:$0xff]
    %v13 = vmul.f32 %v12, %v12
    %v15 = vcombine.high %v13, %v13
    %v17 = vunpack.c.l.s4 1983009808
    %v18 = vunpack.c.0.s8 %v17
    %v19 = vlaneseq
    %v20 = vshrl.u32 %v19, 7
    %v21 = vsub.s32 %v18, %v20
    %v22 = vrot.slane %v13, %v21
    %v24 = vunpack.c.l.s4 1983009808
    %v25 = vunpack.c.0.s8 %v24
    %v26 = vlaneseq
    %v27 = vshrl.u32 %v26, 7
    %v28 = vsub.s32 %v25, %v27
    %v29 = vrot.slane %v15, %v28
    %v30 = vcombine.high %v22, %v22
    %v31 = vcombine.high %v29, %v29
    %vm36 = vcmask 1041408
    %v37 = vsel %vm36, %v22, 0.0
    %v38 = vsel %vm36, %v30, 0.0
    %v39 = vadd.f32 %v37, %v38
    %v40 = vsel %vm36, %v29, 0.0
    %v41 = vadd.f32 %v39, %v40
    %v42 = vsel %vm36, %v31, 0.0
    %v43 = vadd.f32 %v41, %v42
    %44 = vadd.xlane.f32.xlu0 %v43
    %v45 = vpop.xlane.xlu0 %44
    %v46 = vrsqrt.pop %v45
    %v47 = vmul.f32 %v46, 100.0
    %v50 = vunpack.c.l.s4 269488144
    %v51 = vunpack.c.0.s8 %v50
    %v52 = vlaneseq
    %v53 = vshrl.u32 %v52, 7
    %v54 = vsub.s32 %v51, %v53
    %v55 = vrot.slane %v47, %v54
    %v57 = vmul.f32 %v12, %v55
    %v58 = vld [vmem:[%s1] sm:$0xff]
    %v59 = vld [vmem:[%s1 + $0x8] sm:$0xff]
    %v60 = vld [vmem:[%s1 + $0x10] sm:$0xff]
    %v61 = vld [vmem:[%s1 + $0x18] sm:$0xff]
    %v62 = vld [vmem:[%s1 + $0x20] sm:$0xff]
    %v63 = vld [vmem:[%s1 + $0x28] sm:$0xff]
    %v64 = vld [vmem:[%s1 + $0x30] sm:$0xff]
    %v65 = vld [vmem:[%s1 + $0x38] sm:$0xff]
    %v66 = vld [vmem:[%s1 + $0x40] sm:$0xff]
    %v67 = vld [vmem:[%s1 + $0x48] sm:$0xff]
    %v68 = vld [vmem:[%s1 + $0x50] sm:$0xff]
    %v69 = vld [vmem:[%s1 + $0x58] sm:$0xff]
    %v70 = vld [vmem:[%s1 + $0x60] sm:$0xff]
    %v71 = vld [vmem:[%s1 + $0x68] sm:$0xff]
    %v72 = vld [vmem:[%s1 + $0x70] sm:$0xff]
    %v73 = vld [vmem:[%s1 + $0x78] sm:$0xff]
    %v74 = vld [vmem:[%s1 + $0x80] sm:$0xff]
    %v75 = vld [vmem:[%s1 + $0x88] sm:$0xff]
    %v76 = vld [vmem:[%s1 + $0x90] sm:$0xff]
    %v77 = vld [vmem:[%s1 + $0x98] sm:$0xff]
    %v78 = vld [vmem:[%s1 + $0xa0] sm:$0xff]
    %v79 = vld [vmem:[%s1 + $0xa8] sm:$0xff]
    %v80 = vld [vmem:[%s1 + $0xb0] sm:$0xff]
    %v81 = vld [vmem:[%s1 + $0xb8] sm:$0xff]
    %v82 = vld [vmem:[%s1 + $0xc0] sm:$0xff]
    %v83 = vld [vmem:[%s1 + $0xc8] sm:$0xff]
    %v84 = vld [vmem:[%s1 + $0xd0] sm:$0xff]
    %v85 = vld [vmem:[%s1 + $0xd8] sm:$0xff]
    %v86 = vld [vmem:[%s1 + $0xe0] sm:$0xff]
    %v87 = vld [vmem:[%s1 + $0xe8] sm:$0xff]
    %v88 = vld [vmem:[%s1 + $0xf0] sm:$0xff]
    %v89 = vld [vmem:[%s1 + $0xf8] sm:$0xff]
    %v90 = vld [vmem:[%s1 + $0x100] sm:$0xff]
    %v91 = vld [vmem:[%s1 + $0x108] sm:$0xff]
    %v92 = vld [vmem:[%s1 + $0x110] sm:$0xff]
    %v93 = vld [vmem:[%s1 + $0x118] sm:$0xff]
    %v94 = vld [vmem:[%s1 + $0x120] sm:$0xff]
    %v95 = vld [vmem:[%s1 + $0x128] sm:$0xff]
    %v96 = vld [vmem:[%s1 + $0x130] sm:$0xff]
    %v97 = vld [vmem:[%s1 + $0x138] sm:$0xff]
    %v98 = vld [vmem:[%s1 + $0x140] sm:$0xff]
    %v99 = vld [vmem:[%s1 + $0x148] sm:$0xff]
    %v100 = vld [vmem:[%s1 + $0x150] sm:$0xff]
    %v101 = vld [vmem:[%s1 + $0x158] sm:$0xff]
    %v102 = vld [vmem:[%s1 + $0x160] sm:$0xff]
    %v103 = vld [vmem:[%s1 + $0x168] sm:$0xff]
    %v104 = vld [vmem:[%s1 + $0x170] sm:$0xff]
    %v105 = vld [vmem:[%s1 + $0x178] sm:$0xff]
    %v106 = vld [vmem:[%s1 + $0x180] sm:$0xff]
    %v107 = vld [vmem:[%s1 + $0x188] sm:$0xff]
    %v108 = vld [vmem:[%s1 + $0x190] sm:$0xff]
    %v109 = vld [vmem:[%s1 + $0x198] sm:$0xff]
    %v110 = vld [vmem:[%s1 + $0x1a0] sm:$0xff]
    %v111 = vld [vmem:[%s1 + $0x1a8] sm:$0xff]
    %v112 = vld [vmem:[%s1 + $0x1b0] sm:$0xff]
    %v113 = vld [vmem:[%s1 + $0x1b8] sm:$0xff]
    %v114 = vld [vmem:[%s1 + $0x1c0] sm:$0xff]
    %v115 = vld [vmem:[%s1 + $0x1c8] sm:$0xff]
    %v116 = vld [vmem:[%s1 + $0x1d0] sm:$0xff]
    %v117 = vld [vmem:[%s1 + $0x1d8] sm:$0xff]
    %v118 = vld [vmem:[%s1 + $0x1e0] sm:$0xff]
    %v119 = vld [vmem:[%s1 + $0x1e8] sm:$0xff]
    %v120 = vld [vmem:[%s1 + $0x1f0] sm:$0xff]
    %v121 = vld [vmem:[%s1 + $0x1f8] sm:$0xff]
    %v123 = vcombine.high %v57, %v57
    %v125 = vunpack.c.l.s4 1983009808
    %v126 = vunpack.c.0.s8 %v125
    %v127 = vlaneseq
    %v128 = vshrl.u32 %v127, 7
    %v129 = vsub.s32 %v126, %v128
    %v130 = vrot.slane %v57, %v129
    %v132 = vunpack.c.l.s4 1983009808
    %v133 = vunpack.c.0.s8 %v132
    %v134 = vlaneseq
    %v135 = vshrl.u32 %v134, 7
    %v136 = vsub.s32 %v133, %v135
    %v137 = vrot.slane %v123, %v136
    %v138 = vcombine.high %v130, %v130
    %v139 = vcombine.high %v137, %v137
    %144 = vmatprep.subr.mxu0 0.0
    %145 = vmatpush1.msra.mxu0 %v58
    %146 = vmatprep.subr.mxu0 0.0
    %147 = vmatpush1.msra.mxu0 %v59
    %148 = vmatprep.subr.mxu0 0.0
    %149 = vmatpush1.msra.mxu0 %v60
    %150 = vmatprep.subr.mxu0 0.0
    %151 = vmatpush1.msra.mxu0 %v61
    %152 = vmatprep.subr.mxu0 0.0
    %153 = vmatpush1.msra.mxu0 %v62
    %154 = vmatprep.subr.mxu0 0.0
    %155 = vmatpush1.msra.mxu0 %v63
    %156 = vmatprep.subr.mxu0 0.0
    %157 = vmatpush1.msra.mxu0 %v64
    %158 = vmatprep.subr.mxu0 0.0
    %159 = vmatpush1.msra.mxu0 %v65
    %160 = vmatprep.subr.mxu0 0.0
    %161 = vmatpush1.msra.mxu0 %v66
    %162 = vmatprep.subr.mxu0 0.0
    %163 = vmatpush1.msra.mxu0 %v67
    %164 = vmatprep.subr.mxu0 0.0
    %165 = vmatpush1.msra.mxu0 %v68
    %166 = vmatprep.subr.mxu0 0.0
    %167 = vmatpush1.msra.mxu0 %v69
    %168 = vmatprep.subr.mxu0 0.0
    %169 = vmatpush1.msra.mxu0 %v70
    %170 = vmatprep.subr.mxu0 0.0
    %171 = vmatpush1.msra.mxu0 %v71
    %172 = vmatprep.subr.mxu0 0.0
    %173 = vmatpush1.msra.mxu0 %v72
    %174 = vmatprep.subr.mxu0 0.0
    %175 = vmatpush1.msra.mxu0 %v73
    %176 = vmatprep.subr.mxu0 0.0
    %177 = vmatpush1.msra.mxu0 %v74
    %178 = vmatprep.subr.mxu0 0.0
    %179 = vmatpush1.msra.mxu0 %v75
    %180 = vmatprep.subr.mxu0 0.0
    %181 = vmatpush1.msra.mxu0 %v76
    %182 = vmatprep.subr.mxu0 0.0
    %183 = vmatpush1.msra.mxu0 %v77
    %184 = vmatprep.subr.mxu0 0.0
    %185 = vmatpush1.msra.mxu0 %v78
    %186 = vmatprep.subr.mxu0 0.0
    %187 = vmatpush1.msra.mxu0 %v79
    %188 = vmatprep.subr.mxu0 0.0
    %189 = vmatpush1.msra.mxu0 %v80
    %190 = vmatprep.subr.mxu0 0.0
    %191 = vmatpush1.msra.mxu0 %v81
    %192 = vmatprep.subr.mxu0 0.0
    %193 = vmatpush1.msra.mxu0 %v82
    %194 = vmatprep.subr.mxu0 0.0
    %195 = vmatpush1.msra.mxu0 %v83
    %196 = vmatprep.subr.mxu0 0.0
    %197 = vmatpush1.msra.mxu0 %v84
    %198 = vmatprep.subr.mxu0 0.0
    %199 = vmatpush1.msra.mxu0 %v85
    %200 = vmatprep.subr.mxu0 0.0
    %201 = vmatpush1.msra.mxu0 %v86
    %202 = vmatprep.subr.mxu0 0.0
    %203 = vmatpush1.msra.mxu0 %v87
    %204 = vmatprep.subr.mxu0 0.0
    %205 = vmatpush1.msra.mxu0 %v88
    %206 = vmatprep.subr.mxu0 0.0
    %207 = vmatpush1.msra.mxu0 %v89
    %208 = vmatprep.mubr.f32.mxu0 %v138
    %209 = vmatmul.mubr.f32.gmra.mrb[0].mxu0 %v130
    %v210 = vpop.f32.mrb[0].mxu0
    %v211 = vadd.f32 0.0, %v210
    %v212 = vpop.f32.mrb[0].mxu0
    %213 = vdwg.mxu0
    %214 = vmatprep.subr.mxu0 0.0
    %215 = vmatpush1.msra.mxu0 %v90
    %216 = vmatprep.subr.mxu0 0.0
    %217 = vmatpush1.msra.mxu0 %v91
    %218 = vmatprep.subr.mxu0 0.0
    %219 = vmatpush1.msra.mxu0 %v92
    %220 = vmatprep.subr.mxu0 0.0
    %221 = vmatpush1.msra.mxu0 %v93
    %222 = vmatprep.subr.mxu0 0.0
    %223 = vmatpush1.msra.mxu0 %v94
    %224 = vmatprep.subr.mxu0 0.0
    %225 = vmatpush1.msra.mxu0 %v95
    %226 = vmatprep.subr.mxu0 0.0
    %227 = vmatpush1.msra.mxu0 %v96
    %228 = vmatprep.subr.mxu0 0.0
    %229 = vmatpush1.msra.mxu0 %v97
    %230 = vmatprep.subr.mxu0 0.0
    %231 = vmatpush1.msra.mxu0 %v98
    %232 = vmatprep.subr.mxu0 0.0
    %233 = vmatpush1.msra.mxu0 %v99
    %234 = vmatprep.subr.mxu0 0.0
    %235 = vmatpush1.msra.mxu0 %v100
    %236 = vmatprep.subr.mxu0 0.0
    %237 = vmatpush1.msra.mxu0 %v101
    %238 = vmatprep.subr.mxu0 0.0
    %239 = vmatpush1.msra.mxu0 %v102
    %240 = vmatprep.subr.mxu0 0.0
    %241 = vmatpush1.msra.mxu0 %v103
    %242 = vmatprep.subr.mxu0 0.0
    %243 = vmatpush1.msra.mxu0 %v104
    %244 = vmatprep.subr.mxu0 0.0
    %245 = vmatpush1.msra.mxu0 %v105
    %246 = vmatprep.subr.mxu0 0.0
    %247 = vmatpush1.msra.mxu0 %v106
    %248 = vmatprep.subr.mxu0 0.0
    %249 = vmatpush1.msra.mxu0 %v107
    %250 = vmatprep.subr.mxu0 0.0
    %251 = vmatpush1.msra.mxu0 %v108
    %252 = vmatprep.subr.mxu0 0.0
    %253 = vmatpush1.msra.mxu0 %v109
    %254 = vmatprep.subr.mxu0 0.0
    %255 = vmatpush1.msra.mxu0 %v110
    %256 = vmatprep.subr.mxu0 0.0
    %257 = vmatpush1.msra.mxu0 %v111
    %258 = vmatprep.subr.mxu0 0.0
    %259 = vmatpush1.msra.mxu0 %v112
    %260 = vmatprep.subr.mxu0 0.0
    %261 = vmatpush1.msra.mxu0 %v113
    %262 = vmatprep.subr.mxu0 0.0
    %263 = vmatpush1.msra.mxu0 %v114
    %264 = vmatprep.subr.mxu0 0.0
    %265 = vmatpush1.msra.mxu0 %v115
    %266 = vmatprep.subr.mxu0 0.0
    %267 = vmatpush1.msra.mxu0 %v116
    %268 = vmatprep.subr.mxu0 0.0
    %269 = vmatpush1.msra.mxu0 %v117
    %270 = vmatprep.subr.mxu0 0.0
    %271 = vmatpush1.msra.mxu0 %v118
    %272 = vmatprep.subr.mxu0 0.0
    %273 = vmatpush1.msra.mxu0 %v119
    %274 = vmatprep.subr.mxu0 0.0
    %275 = vmatpush1.msra.mxu0 %v120
    %276 = vmatprep.subr.mxu0 0.0
    %277 = vmatpush1.msra.mxu0 %v121
    %278 = vmatprep.mubr.f32.mxu0 %v139
    %279 = vmatmul.mubr.f32.gmra.mrb[0].mxu0 %v137
    %v280 = vpop.f32.mrb[0].mxu0
    %v281 = vadd.f32 %v211, %v280
    %v282 = vpop.f32.mrb[0].mxu0
    %283 = vdwg.mxu0
    %vm284 = vcmask 123904
    %285 = vst.msk [vmem:[#allocation2] sm:$0x3] %vm284, %v281
    // Predicated region
    $region10: #{tpu_custom_call.1} parent=1 // pred_check
      _
    $region11: #{tpu_custom_call.1} parent=1 // pred_check_branch
      %287 = sbr.rel (0) target = $region13
    $region12: #{tpu_custom_call.1} parent=1 // pred_region
      %s289 = ssub.s32 32, 32
      %290 = vsyncadd [#allocation3], %s289
      %s292 = sshll.u32 [#allocation2], 4
      %s293 = int_to_ptr.vmem [resolvable:$true] %s292
      %295 = dma.vmem_to_hbm [thread:$0]  %s293, 32, %s2, [#allocation3]
    $region13: #{tpu_custom_call.1} parent=1 // pred_fallthru
      _
    // Predicated region
    $region14: #{tpu_custom_call.1} parent=1 // pred_check
      _
    $region15: #{tpu_custom_call.1} parent=1 // pred_check_branch
      %297 = sbr.rel (0) target = $region17
    $region16: #{tpu_custom_call.1} parent=1 // pred_region
      %298 = dma.done [#allocation3], 32
    $region17: #{tpu_custom_call.1} parent=1 // pred_fallthru
      _
    %299 = vsyncpa [#allocation3], 1

</llo_original>
